<compile_context>
chip_gen: v6e
topology: v6e:2x2x1
jax: 0.10.0
libtpu: 0.0.40
codegen_flags: <defaults>
</compile_context>

<pallas_src>
from functools import partial

import jax
import jax.numpy as jnp
from jax.experimental import pallas as pl
from jax.experimental.pallas import tpu as pltpu

LANE = 128


def _reproj_loss_kernel(f_ref, data_ref, w_ref, out_ref, *, lane):
    L = lane
    f = f_ref[0]                                     # |f| (scalar, SMEM)

    # Fused joint regressor + translation: (B, L) @ (L, 4L) -> (B, [x|y|z|z]).
    # One MXU push; the transl injection rides as one-hot rows in w.
    j = jnp.dot(data_ref[:, 0:L], w_ref[...], preferred_element_type=jnp.float32)
    jxy = j[:, 0:2 * L]                              # (B, 2L) vreg-aligned slice
    jzz = j[:, 2 * L:4 * L]                          # (B, 2L) z duplicated per axis

    # Pinhole projection fused over x & y.  Exact division (no approx recip).
    # Padded z lanes are held at 1.0 by the const row in w, so no inf/NaN.
    # TODO(synk): no guard for z near zero (matches the torch module).
    proj = f * jxy / jzz                             # (B, 2L)

    # Targets pre-shifted by (-c - eps) in the wrapper; padded lanes are zero on
    # both sides, so they contribute exactly 0 to the reduction.
    d = proj - data_ref[:, L:3 * L]                  # (B, 2L)
    sq = d * d
    nx = jnp.sqrt(jnp.sum(sq[:, 0:L], axis=-1, keepdims=True))       # (B, 1)
    ny = jnp.sqrt(jnp.sum(sq[:, L:2 * L], axis=-1, keepdims=True))   # (B, 1)

    conf_x = data_ref[:, 3 * L:3 * L + 1]            # (B, 1)
    conf_y = data_ref[:, 3 * L + 1:3 * L + 2]        # (B, 1)
    out_ref[0, 0] = jnp.sum(nx * conf_x + ny * conf_y)


def build_fused_weights(Wx, Wy, Wz, target_indexes, lane=LANE):
    """Precompute ONCE: model regressor + keypoint gather + transl injection.

    Layout (columns): [x block @0 | y block @lane | z block @2*lane | z @3*lane].
    Rows: [P regressor rows | transl_x | transl_y | transl_z | const-1 | 0-pad].
    """
    idx = jnp.asarray(target_indexes, dtype=jnp.int32)
    P = Wx.shape[0]
    K = len(target_indexes)
    assert P + 4 <= lane, "pose dim + transl + const must fit one 128-lane vreg"
    w = jnp.zeros((lane, 4 * lane), jnp.float32)
    wx = Wx[:, idx].astype(jnp.float32)
    wy = Wy[:, idx].astype(jnp.float32)
    wz = Wz[:, idx].astype(jnp.float32)
    w = w.at[:P, 0:K].set(wx)
    w = w.at[:P, lane:lane + K].set(wy)
    w = w.at[:P, 2 * lane:2 * lane + K].set(wz)
    w = w.at[:P, 3 * lane:3 * lane + K].set(wz)
    # translation one-hot injection rows: joints_3d = pose @ W + transl
    w = w.at[P + 0, 0:K].set(1.0)
    w = w.at[P + 1, lane:lane + K].set(1.0)
    w = w.at[P + 2, 2 * lane:2 * lane + K].set(1.0)
    w = w.at[P + 2, 3 * lane:3 * lane + K].set(1.0)
    # const-1 row keeps padded z lanes at 1.0 so 1/z stays finite there
    w = w.at[P + 3, 2 * lane + K:3 * lane].set(1.0)
    w = w.at[P + 3, 3 * lane + K:4 * lane].set(1.0)
    return w


@partial(jax.jit, static_argnames=("target_indexes",))
def hand_reprojection_loss(hand_pose, body_pose, transl, target, target_indexes,
                           confidences, f, w_fused, cx, cy):
    """Scalar reprojection loss (f32). `w_fused` comes from build_fused_weights."""
    K = len(target_indexes)
    idx = jnp.asarray(target_indexes, dtype=jnp.int32)
    B = hand_pose.shape[0]
    P = hand_pose.shape[-1] + body_pose.shape[-1]
    lane = LANE
    eps = 1e-6

    # Single lane-padded VMEM operand (B, 4*lane):
    #   [0 ,  L) : pose | transl | 1 | 0-pad          (matmul LHS)
    #   [L , 2L) : tgt_x - cx - eps | 0-pad
    #   [2L, 3L) : tgt_y - cy - eps | 0-pad
    #   [3L, 4L) : conf_x, conf_y | 0-pad
    pose_seg = jnp.concatenate(
        [hand_pose.astype(jnp.float32), body_pose.astype(jnp.float32),
         transl.astype(jnp.float32), jnp.ones((B, 1), jnp.float32),
         jnp.zeros((B, lane - P - 4), jnp.float32)], axis=-1)
    tx = target[:, 0, idx].astype(jnp.float32) - jnp.float32(cx) - eps
    ty = target[:, 1, idx].astype(jnp.float32) - jnp.float32(cy) - eps
    pad_k = jnp.zeros((B, lane - K), jnp.float32)
    cf = jnp.concatenate([confidences.astype(jnp.float32),
                          jnp.zeros((B, lane - 2), jnp.float32)], axis=-1)
    data = jnp.concatenate([pose_seg, tx, pad_k, ty, pad_k, cf], axis=-1)  # (B,4L)

    f_abs = jnp.abs(jnp.asarray(f, jnp.float32)).reshape((1,))   # torch.abs(f)

    smem = pl.BlockSpec(memory_space=pltpu.MemorySpace.SMEM)
    vmem = pl.BlockSpec(memory_space=pltpu.MemorySpace.VMEM)

    out = pl.pallas_call(
        partial(_reproj_loss_kernel, lane=lane),
        out_shape=jax.ShapeDtypeStruct((1, 1), jnp.float32),
        in_specs=[smem, vmem, vmem],
        out_specs=smem,
    )(f_abs, data, w_fused)
    return out[0, 0]


def _reference(hand_pose, body_pose, transl, target, target_indexes,
               confidences, f, Wx, Wy, Wz, cx, cy):
    """Pure-JAX mirror of the torch semantics for validation."""
    pose = jnp.concatenate([hand_pose, body_pose], axis=-1).astype(jnp.float32)
    j3 = jnp.stack([pose @ Wx, pose @ Wy, pose @ Wz], axis=-1) + transl[:, None, :]
    proj = jnp.abs(f) * j3[..., :2] / j3[..., 2:3] + jnp.array([cx, cy], jnp.float32)
    idx = jnp.asarray(target_indexes)
    tgt = target[:, :, idx]                                     # (B, 2, K)
    eff = jnp.transpose(proj[:, idx, :], (0, 2, 1))             # (B, 2, K)
    n = jnp.sqrt(jnp.sum((eff - tgt + 1e-6) ** 2, axis=-1, keepdims=True))  # (B,2,1)
    n = n * confidences[:, :, None]
    return jnp.sum(n)


if __name__ == "__main__":
    key = jax.random.PRNGKey(0)
    B, J, K = 2, 21, 8            # batch, total joints, keypoints of interest
    HAND_DIM, BODY_DIM = 16, 16   # synthetic pose parameter dims
    P = HAND_DIM + BODY_DIM

    k = jax.random.split(key, 9)
    hand_pose = jax.random.normal(k[0], (B, HAND_DIM), jnp.float32) * 0.1
    body_pose = jax.random.normal(k[1], (B, BODY_DIM), jnp.float32) * 0.1
    transl = jnp.concatenate(
        [jax.random.normal(k[2], (B, 2), jnp.float32) * 0.1,
         jnp.full((B, 1), 5.0, jnp.float32)], axis=-1)          # keep z away from 0
    target = jax.random.uniform(k[3], (B, 2, J), jnp.float32, 0.0, 224.0)
    confidences = jax.random.uniform(k[4], (B, 2), jnp.float32, 0.5, 1.0)

    # deterministic synthetic "SMPLH" joint-regressor weights
    Wx = jax.random.normal(k[5], (P, J), jnp.float32) * 0.05
    Wy = jax.random.normal(k[6], (P, J), jnp.float32) * 0.05
    Wz = jax.random.normal(k[7], (P, J), jnp.float32) * 0.01

    target_indexes = (0, 4, 8, 12, 16, 20, 2, 6)
    f_cam, cx, cy = 1000.0, 112.0, 112.0

    # Hoisted: fused weight built once, reused across every loss evaluation.
    w_fused = build_fused_weights(Wx, Wy, Wz, target_indexes)
    w_fused = jax.block_until_ready(w_fused)

    loss = hand_reprojection_loss(hand_pose, body_pose, transl, target,
                                  target_indexes, confidences, f_cam,
                                  w_fused, cx, cy)
    loss = jax.block_until_ready(loss)

    ref = _reference(hand_pose, body_pose, transl, target, target_indexes,
                     confidences, f_cam, Wx, Wy, Wz, cx, cy)

    assert jnp.isfinite(loss)
    assert jnp.allclose(loss, ref, rtol=1e-4, atol=1e-2), (loss, ref)
    print("KERNEL_OK")
</pallas_src>

<mosaic_0001>
module attributes {stable_mosaic.version = 11 : i64} {
  func.func @_reproj_loss_kernel(%arg0: memref<1xf32, #tpu.memory_space<smem>>, %arg1: memref<2x512xf32, #tpu.memory_space<vmem>>, %arg2: memref<128x512xf32, #tpu.memory_space<vmem>>, %arg3: memref<1x1xf32, #tpu.memory_space<smem>>) attributes {dimension_semantics = [], scalar_prefetch = 0 : i64, scratch_operands = 0 : i64, tpu.core_type = #tpu.core_type<tc>} {
    %c0 = arith.constant 0 : index
    %0 = memref.load %arg0[%c0] : memref<1xf32, #tpu.memory_space<smem>>
    %c0_0 = arith.constant 0 : index
    %c0_1 = arith.constant 0 : index
    %1 = vector.load %arg1[%c0_0, %c0_1] : memref<2x512xf32, #tpu.memory_space<vmem>>, vector<2x128xf32>
    %c0_2 = arith.constant 0 : index
    %c0_3 = arith.constant 0 : index
    %2 = vector.load %arg2[%c0_2, %c0_3] : memref<128x512xf32, #tpu.memory_space<vmem>>, vector<128x512xf32>
    %cst = arith.constant dense<0.000000e+00> : vector<2x512xf32>
    %3 = tpu.matmul %1, %2, %cst {dimension_numbers = #tpu.dot_dimension_numbers<[1], [0], [0], [1], [0, 0, 1, 1], [], []>} : vector<2x128xf32>, vector<128x512xf32>, vector<2x512xf32> -> vector<2x512xf32>
    %4 = vector.extract_strided_slice %3 {offsets = [0, 0], sizes = [2, 256], strides = [1, 1]} : vector<2x512xf32> to vector<2x256xf32>
    %5 = vector.extract_strided_slice %3 {offsets = [0, 256], sizes = [2, 256], strides = [1, 1]} : vector<2x512xf32> to vector<2x256xf32>
    %6 = vector.broadcast %0 : f32 to vector<2x256xf32>
    %7 = arith.mulf %6, %4 : vector<2x256xf32>
    %8 = arith.divf %7, %5 : vector<2x256xf32>
    %c0_4 = arith.constant 0 : index
    %c128 = arith.constant 128 : index
    %9 = vector.load %arg1[%c0_4, %c128] : memref<2x512xf32, #tpu.memory_space<vmem>>, vector<2x256xf32>
    %10 = arith.subf %8, %9 : vector<2x256xf32>
    %11 = arith.mulf %10, %10 : vector<2x256xf32>
    %12 = vector.extract_strided_slice %11 {offsets = [0, 0], sizes = [2, 128], strides = [1, 1]} : vector<2x256xf32> to vector<2x128xf32>
    %cst_5 = arith.constant dense<0.000000e+00> : vector<2xf32>
    %13 = vector.multi_reduction <add>, %12, %cst_5 [1] : vector<2x128xf32> to vector<2xf32>
    %14 = vector.shape_cast %13 : vector<2xf32> to vector<2x1xf32>
    %15 = math.sqrt %14 : vector<2x1xf32>
    %16 = vector.extract_strided_slice %11 {offsets = [0, 128], sizes = [2, 128], strides = [1, 1]} : vector<2x256xf32> to vector<2x128xf32>
    %cst_6 = arith.constant dense<0.000000e+00> : vector<2xf32>
    %17 = vector.multi_reduction <add>, %16, %cst_6 [1] : vector<2x128xf32> to vector<2xf32>
    %18 = vector.shape_cast %17 : vector<2xf32> to vector<2x1xf32>
    %19 = math.sqrt %18 : vector<2x1xf32>
    %c0_7 = arith.constant 0 : index
    %c384 = arith.constant 384 : index
    %20 = vector.load %arg1[%c0_7, %c384] : memref<2x512xf32, #tpu.memory_space<vmem>>, vector<2x1xf32>
    %c0_8 = arith.constant 0 : index
    %c385 = arith.constant 385 : index
    %21 = vector.load %arg1[%c0_8, %c385] : memref<2x512xf32, #tpu.memory_space<vmem>>, vector<2x1xf32>
    %22 = arith.mulf %15, %20 : vector<2x1xf32>
    %23 = arith.mulf %19, %21 : vector<2x1xf32>
    %24 = arith.addf %22, %23 : vector<2x1xf32>
    %25 = vector.shape_cast %24 : vector<2x1xf32> to vector<1x2x1xf32>
    %cst_9 = arith.constant dense<0.000000e+00> : vector<1xf32>
    %26 = vector.multi_reduction <add>, %25, %cst_9 [1, 2] : vector<1x2x1xf32> to vector<1xf32>
    %27 = vector.shape_cast %26 : vector<1xf32> to vector<1x1x1xf32>
    %28 = vector.extract %27[0, 0, 0] : f32 from vector<1x1x1xf32>
    %c0_10 = arith.constant 0 : index
    %c0_11 = arith.constant 0 : index
    %29 = memref.load %arg3[%c0_10, %c0_11] : memref<1x1xf32, #tpu.memory_space<smem>>
    memref.store %28, %arg3[%c0_10, %c0_11] : memref<1x1xf32, #tpu.memory_space<smem>>
    return
  }
}

</mosaic_0001>

<llo_original>
// kernel: hand_reprojection_loss.1
$region0: #{hand_reprojection_loss.1}
  #allocation0 [shape = 'u32[]', space=smem, size = 0x4, offset = 0x4, fixed_abs, tag = 'smem constant byte address 0x4 - core index']
  #allocation1 [shape = 'u32[144,128]{1,0:T(1,128)}', space=vmem, size = 0x12000, scoped, tag = 'internal scratch']
  #allocation2 [shape = 'f32[1]{0:T(128)S(6)}', space=smem, size = 0x200, scoped, tag = 'scoped memory for hand_reprojection_loss.1']
  %s0 = inlined_call_operand.<no memory space> [shape: f32[1], index: 0, kind: input, shape index: {}]
  %s1 = inlined_call_operand.vmem [shape: f32[2,512], index: 1, kind: input, shape index: {}]
  %s2 = inlined_call_operand.hbm [shape: f32[128,512], index: 2, kind: input, shape index: {}]
  %s3 = inlined_call_operand.hbm [shape: f32[1,1], index: 3, kind: output, shape index: {}]
  %s4 = sld [smem:[#allocation0]]
  $region26: #{hand_reprojection_loss.1} parent=0
    _
  %s6 = ssub.s32 1, %s4
  %s7 = scalar_select 0, %s6, %s4
  %8 = sst [smem:[#allocation2]] %s0
  $region1: #{hand_reprojection_loss.1} parent=0
    #allocation3 [shape = 'u8[262144]{0}', space=vmem, size = 0x40000, scoped, tag = 'input window, operand 2, single buffered']
    #allocation4 [shape = 's32[1]{0}', space=sflag, size = 0x4, scoped, tag = 'scoped memory for hand_reprojection_loss.1']
    #allocation5 [shape = 's32[1]{0}', space=sflag, size = 0x4, scoped, tag = 'scoped memory for hand_reprojection_loss.1']
    #allocation6 [shape = 'u8[512]{0}', space=smem, size = 0x200, scoped, tag = 'output window, operand 0, single buffered']
    %9 = vsyncpa [#allocation4], 0
    %10 = vsyncpa [#allocation5], 0
    // Predicated region
    $region2: #{hand_reprojection_loss.1} parent=1 // pred_check
      _
    $region3: #{hand_reprojection_loss.1} parent=1 // pred_check_branch
      %12 = sbr.rel (0) target = $region5
    $region4: #{hand_reprojection_loss.1} parent=1 // pred_region
      _
    $region5: #{hand_reprojection_loss.1} parent=1 // pred_fallthru
      _
    // Predicated region
    $region6: #{hand_reprojection_loss.1} parent=1 // pred_check
      _
    $region7: #{hand_reprojection_loss.1} parent=1 // pred_check_branch
      %14 = sbr.rel (0) target = $region9
    $region8: #{hand_reprojection_loss.1} parent=1 // pred_region
      _
    $region9: #{hand_reprojection_loss.1} parent=1 // pred_fallthru
      _
    // Predicated region
    $region10: #{hand_reprojection_loss.1} parent=1 // pred_check
      _
    $region11: #{hand_reprojection_loss.1} parent=1 // pred_check_branch
      %16 = sbr.rel (0) target = $region13
    $region12: #{hand_reprojection_loss.1} parent=1 // pred_region
      %s18 = ssub.s32 8192, 8192
      %19 = vsyncadd [#allocation4], %s18
      %s20 = sshll.u32 [#allocation3], 4
      %s21 = int_to_ptr.vmem [resolvable:$true] %s20
      %26 = dma.hbm_to_vmem [thread:$0]  %s2, 8192, %s21, [#allocation4], 512, 512, 32
    $region13: #{hand_reprojection_loss.1} parent=1 // pred_fallthru
      _
    // Predicated region
    $region14: #{hand_reprojection_loss.1} parent=1 // pred_check
      _
    $region15: #{hand_reprojection_loss.1} parent=1 // pred_check_branch
      %28 = sbr.rel (0) target = $region17
    $region16: #{hand_reprojection_loss.1} parent=1 // pred_region
      %29 = dma.done [#allocation4], 8192
    $region17: #{hand_reprojection_loss.1} parent=1 // pred_fallthru
      _
    %s30 = sld [smem:[#allocation2]]
    %v31 = vld [vmem:[%s1] sm:$0x3]
    %v32 = vld [vmem:[#allocation3] sm:$0xff]
    %v33 = vld [vmem:[#allocation3 + $0x8] sm:$0xff]
    %v34 = vld [vmem:[#allocation3 + $0x10] sm:$0xff]
    %v35 = vld [vmem:[#allocation3 + $0x18] sm:$0xff]
    %v36 = vld [vmem:[#allocation3 + $0x20] sm:$0xff]
    %v37 = vld [vmem:[#allocation3 + $0x28] sm:$0xff]
    %v38 = vld [vmem:[#allocation3 + $0x30] sm:$0xff]
    %v39 = vld [vmem:[#allocation3 + $0x38] sm:$0xff]
    %v40 = vld [vmem:[#allocation3 + $0x40] sm:$0xff]
    %v41 = vld [vmem:[#allocation3 + $0x48] sm:$0xff]
    %v42 = vld [vmem:[#allocation3 + $0x50] sm:$0xff]
    %v43 = vld [vmem:[#allocation3 + $0x58] sm:$0xff]
    %v44 = vld [vmem:[#allocation3 + $0x60] sm:$0xff]
    %v45 = vld [vmem:[#allocation3 + $0x68] sm:$0xff]
    %v46 = vld [vmem:[#allocation3 + $0x70] sm:$0xff]
    %v47 = vld [vmem:[#allocation3 + $0x78] sm:$0xff]
    %v48 = vld [vmem:[#allocation3 + $0x80] sm:$0xff]
    %v49 = vld [vmem:[#allocation3 + $0x88] sm:$0xff]
    %v50 = vld [vmem:[#allocation3 + $0x90] sm:$0xff]
    %v51 = vld [vmem:[#allocation3 + $0x98] sm:$0xff]
    %v52 = vld [vmem:[#allocation3 + $0xa0] sm:$0xff]
    %v53 = vld [vmem:[#allocation3 + $0xa8] sm:$0xff]
    %v54 = vld [vmem:[#allocation3 + $0xb0] sm:$0xff]
    %v55 = vld [vmem:[#allocation3 + $0xb8] sm:$0xff]
    %v56 = vld [vmem:[#allocation3 + $0xc0] sm:$0xff]
    %v57 = vld [vmem:[#allocation3 + $0xc8] sm:$0xff]
    %v58 = vld [vmem:[#allocation3 + $0xd0] sm:$0xff]
    %v59 = vld [vmem:[#allocation3 + $0xd8] sm:$0xff]
    %v60 = vld [vmem:[#allocation3 + $0xe0] sm:$0xff]
    %v61 = vld [vmem:[#allocation3 + $0xe8] sm:$0xff]
    %v62 = vld [vmem:[#allocation3 + $0xf0] sm:$0xff]
    %v63 = vld [vmem:[#allocation3 + $0xf8] sm:$0xff]
    %v64 = vld [vmem:[#allocation3 + $0x100] sm:$0xff]
    %v65 = vld [vmem:[#allocation3 + $0x108] sm:$0xff]
    %v66 = vld [vmem:[#allocation3 + $0x110] sm:$0xff]
    %v67 = vld [vmem:[#allocation3 + $0x118] sm:$0xff]
    %v68 = vld [vmem:[#allocation3 + $0x120] sm:$0xff]
    %v69 = vld [vmem:[#allocation3 + $0x128] sm:$0xff]
    %v70 = vld [vmem:[#allocation3 + $0x130] sm:$0xff]
    %v71 = vld [vmem:[#allocation3 + $0x138] sm:$0xff]
    %v72 = vld [vmem:[#allocation3 + $0x140] sm:$0xff]
    %v73 = vld [vmem:[#allocation3 + $0x148] sm:$0xff]
    %v74 = vld [vmem:[#allocation3 + $0x150] sm:$0xff]
    %v75 = vld [vmem:[#allocation3 + $0x158] sm:$0xff]
    %v76 = vld [vmem:[#allocation3 + $0x160] sm:$0xff]
    %v77 = vld [vmem:[#allocation3 + $0x168] sm:$0xff]
    %v78 = vld [vmem:[#allocation3 + $0x170] sm:$0xff]
    %v79 = vld [vmem:[#allocation3 + $0x178] sm:$0xff]
    %v80 = vld [vmem:[#allocation3 + $0x180] sm:$0xff]
    %v81 = vld [vmem:[#allocation3 + $0x188] sm:$0xff]
    %v82 = vld [vmem:[#allocation3 + $0x190] sm:$0xff]
    %v83 = vld [vmem:[#allocation3 + $0x198] sm:$0xff]
    %v84 = vld [vmem:[#allocation3 + $0x1a0] sm:$0xff]
    %v85 = vld [vmem:[#allocation3 + $0x1a8] sm:$0xff]
    %v86 = vld [vmem:[#allocation3 + $0x1b0] sm:$0xff]
    %v87 = vld [vmem:[#allocation3 + $0x1b8] sm:$0xff]
    %v88 = vld [vmem:[#allocation3 + $0x1c0] sm:$0xff]
    %v89 = vld [vmem:[#allocation3 + $0x1c8] sm:$0xff]
    %v90 = vld [vmem:[#allocation3 + $0x1d0] sm:$0xff]
    %v91 = vld [vmem:[#allocation3 + $0x1d8] sm:$0xff]
    %v92 = vld [vmem:[#allocation3 + $0x1e0] sm:$0xff]
    %v93 = vld [vmem:[#allocation3 + $0x1e8] sm:$0xff]
    %v94 = vld [vmem:[#allocation3 + $0x1f0] sm:$0xff]
    %v95 = vld [vmem:[#allocation3 + $0x1f8] sm:$0xff]
    %96 = vmatprep.subr.mxu0 %v93
    %97 = vmatpush1.msra.mxu0 %v92
    %98 = vmatprep.subr.mxu0 %v89
    %99 = vmatpush1.msra.mxu0 %v88
    %100 = vmatprep.subr.mxu0 %v85
    %101 = vmatpush1.msra.mxu0 %v84
    %102 = vmatprep.subr.mxu0 %v81
    %103 = vmatpush1.msra.mxu0 %v80
    %104 = vmatprep.subr.mxu0 %v77
    %105 = vmatpush1.msra.mxu0 %v76
    %106 = vmatprep.subr.mxu0 %v73
    %107 = vmatpush1.msra.mxu0 %v72
    %108 = vmatprep.subr.mxu0 %v69
    %109 = vmatpush1.msra.mxu0 %v68
    %110 = vmatprep.subr.mxu0 %v65
    %111 = vmatpush1.msra.mxu0 %v64
    %112 = vmatprep.subr.mxu0 %v61
    %113 = vmatpush1.msra.mxu0 %v60
    %114 = vmatprep.subr.mxu0 %v57
    %115 = vmatpush1.msra.mxu0 %v56
    %116 = vmatprep.subr.mxu0 %v53
    %117 = vmatpush1.msra.mxu0 %v52
    %118 = vmatprep.subr.mxu0 %v49
    %119 = vmatpush1.msra.mxu0 %v48
    %120 = vmatprep.subr.mxu0 %v45
    %121 = vmatpush1.msra.mxu0 %v44
    %122 = vmatprep.subr.mxu0 %v41
    %123 = vmatpush1.msra.mxu0 %v40
    %124 = vmatprep.subr.mxu0 %v37
    %125 = vmatpush1.msra.mxu0 %v36
    %126 = vmatprep.subr.mxu0 %v33
    %127 = vmatpush1.msra.mxu0 %v32
    %128 = vmatprep.subr.mxu0 0.0
    %129 = vmatpush2.msra.mxu0 0.0
    %130 = vmatprep.subr.mxu0 0.0
    %131 = vmatpush2.msra.mxu0 0.0
    %132 = vmatprep.subr.mxu0 0.0
    %133 = vmatpush2.msra.mxu0 0.0
    %134 = vmatprep.subr.mxu0 0.0
    %135 = vmatpush2.msra.mxu0 0.0
    %136 = vmatprep.subr.mxu0 0.0
    %137 = vmatpush2.msra.mxu0 0.0
    %138 = vmatprep.subr.mxu0 0.0
    %139 = vmatpush2.msra.mxu0 0.0
    %140 = vmatprep.subr.mxu0 0.0
    %141 = vmatpush2.msra.mxu0 0.0
    %142 = vmatprep.subr.mxu0 0.0
    %143 = vmatpush2.msra.mxu0 0.0
    %144 = vmatprep.subr.mxu0 0.0
    %145 = vmatpush2.msra.mxu0 0.0
    %146 = vmatprep.subr.mxu0 0.0
    %147 = vmatpush2.msra.mxu0 0.0
    %148 = vmatprep.subr.mxu0 0.0
    %149 = vmatpush2.msra.mxu0 0.0
    %150 = vmatprep.subr.mxu0 0.0
    %151 = vmatpush2.msra.mxu0 0.0
    %152 = vmatprep.subr.mxu0 0.0
    %153 = vmatpush2.msra.mxu0 0.0
    %154 = vmatprep.subr.mxu0 0.0
    %155 = vmatpush2.msra.mxu0 0.0
    %156 = vmatprep.subr.mxu0 0.0
    %157 = vmatpush2.msra.mxu0 0.0
    %158 = vmatprep.subr.mxu0 0.0
    %159 = vmatpush2.msra.mxu0 0.0
    %160 = vmatprep.mubr.f32.mxu0 0.0
    %161 = vmatmul.mubr.f32.gmra.mxu0 %v31
    %v162 = vpop.f32.mrf.mxu0
    %v163 = vadd.f32 0.0, %v162
    %v164 = vpop.f32.mrf.mxu0
    %v165 = vadd.f32 0.0, %v164
    %166 = vdwg.mxu0
    %167 = vmatprep.subr.mxu0 %v95
    %168 = vmatpush1.msra.mxu0 %v94
    %169 = vmatprep.subr.mxu0 %v91
    %170 = vmatpush1.msra.mxu0 %v90
    %171 = vmatprep.subr.mxu0 %v87
    %172 = vmatpush1.msra.mxu0 %v86
    %173 = vmatprep.subr.mxu0 %v83
    %174 = vmatpush1.msra.mxu0 %v82
    %175 = vmatprep.subr.mxu0 %v79
    %176 = vmatpush1.msra.mxu0 %v78
    %177 = vmatprep.subr.mxu0 %v75
    %178 = vmatpush1.msra.mxu0 %v74
    %179 = vmatprep.subr.mxu0 %v71
    %180 = vmatpush1.msra.mxu0 %v70
    %181 = vmatprep.subr.mxu0 %v67
    %182 = vmatpush1.msra.mxu0 %v66
    %183 = vmatprep.subr.mxu0 %v63
    %184 = vmatpush1.msra.mxu0 %v62
    %185 = vmatprep.subr.mxu0 %v59
    %186 = vmatpush1.msra.mxu0 %v58
    %187 = vmatprep.subr.mxu0 %v55
    %188 = vmatpush1.msra.mxu0 %v54
    %189 = vmatprep.subr.mxu0 %v51
    %190 = vmatpush1.msra.mxu0 %v50
    %191 = vmatprep.subr.mxu0 %v47
    %192 = vmatpush1.msra.mxu0 %v46
    %193 = vmatprep.subr.mxu0 %v43
    %194 = vmatpush1.msra.mxu0 %v42
    %195 = vmatprep.subr.mxu0 %v39
    %196 = vmatpush1.msra.mxu0 %v38
    %197 = vmatprep.subr.mxu0 %v35
    %198 = vmatpush1.msra.mxu0 %v34
    %199 = vmatprep.subr.mxu0 0.0
    %200 = vmatpush2.msra.mxu0 0.0
    %201 = vmatprep.subr.mxu0 0.0
    %202 = vmatpush2.msra.mxu0 0.0
    %203 = vmatprep.subr.mxu0 0.0
    %204 = vmatpush2.msra.mxu0 0.0
    %205 = vmatprep.subr.mxu0 0.0
    %206 = vmatpush2.msra.mxu0 0.0
    %207 = vmatprep.subr.mxu0 0.0
    %208 = vmatpush2.msra.mxu0 0.0
    %209 = vmatprep.subr.mxu0 0.0
    %210 = vmatpush2.msra.mxu0 0.0
    %211 = vmatprep.subr.mxu0 0.0
    %212 = vmatpush2.msra.mxu0 0.0
    %213 = vmatprep.subr.mxu0 0.0
    %214 = vmatpush2.msra.mxu0 0.0
    %215 = vmatprep.subr.mxu0 0.0
    %216 = vmatpush2.msra.mxu0 0.0
    %217 = vmatprep.subr.mxu0 0.0
    %218 = vmatpush2.msra.mxu0 0.0
    %219 = vmatprep.subr.mxu0 0.0
    %220 = vmatpush2.msra.mxu0 0.0
    %221 = vmatprep.subr.mxu0 0.0
    %222 = vmatpush2.msra.mxu0 0.0
    %223 = vmatprep.subr.mxu0 0.0
    %224 = vmatpush2.msra.mxu0 0.0
    %225 = vmatprep.subr.mxu0 0.0
    %226 = vmatpush2.msra.mxu0 0.0
    %227 = vmatprep.subr.mxu0 0.0
    %228 = vmatpush2.msra.mxu0 0.0
    %229 = vmatprep.subr.mxu0 0.0
    %230 = vmatpush2.msra.mxu0 0.0
    %231 = vmatprep.mubr.f32.mxu0 0.0
    %232 = vmatmul.mubr.f32.gmra.mxu0 %v31
    %v233 = vpop.f32.mrf.mxu0
    %v234 = vadd.f32 0.0, %v233
    %v235 = vpop.f32.mrf.mxu0
    %v236 = vadd.f32 0.0, %v235
    %237 = vdwg.mxu0
    %v238 = vstv %s30
    %v239 = vmul.f32 %v238, %v163
    %v240 = vmul.f32 %v238, %v165
    %v241 = vrcp.pop %v234
    %v242 = vmul.f32 %v239, %v241
    %v243 = vrcp.pop %v236
    %v244 = vmul.f32 %v240, %v243
    %v245 = vld [vmem:[%s1 + $0x2] sm:$0xf]
    %v248 = vunpack.c.l.s4 1983009808
    %v249 = vunpack.c.0.s8 %v248
    %v250 = vlaneseq
    %v251 = vshrl.u32 %v250, 7
    %v252 = vsub.s32 %v249, %v251
    %v253 = vrot.slane %v245, %v252
    %v254 = vcombine.high %v253, %v253
    %v257 = vsub.f32 %v242, %v253
    %v258 = vsub.f32 %v244, %v254
    %v259 = vmul.f32 %v257, %v257
    %v260 = vmul.f32 %v258, %v258
    %vm261 = vcmask 1041408
    %v262 = vsel %vm261, %v259, 0.0
    %263 = vadd.xlane.f32.xlu0 %v262
    %v264 = vpop.xlane.xlu0 %263
    %v265 = vrsqrt.pop %v264
    %v266 = vmul.f32 %v264, %v265
    %vm267 = vcmp.eq.f32.partialorder %v264, inf
    %v268 = vsel %vm267, %v264, %v266
    %vm269 = vcmp.eq.f32.partialorder %v264, 0.0
    %v270 = vand.u32 %v264, 2147483648
    %v271 = vsel %vm269, %v270, %v268
    %v272 = vsel %vm261, %v260, 0.0
    %273 = vadd.xlane.f32.xlu0 %v272
    %v274 = vpop.xlane.xlu0 %273
    %v275 = vrsqrt.pop %v274
    %v276 = vmul.f32 %v274, %v275
    %vm277 = vcmp.eq.f32.partialorder %v274, inf
    %v278 = vsel %vm277, %v274, %v276
    %vm279 = vcmp.eq.f32.partialorder %v274, 0.0
    %v280 = vand.u32 %v274, 2147483648
    %v281 = vsel %vm279, %v280, %v278
    %v282 = vld [vmem:[%s1 + $0x6] sm:$0x3]
    %v283 = vmul.f32 %v271, %v282
    %v286 = vunpack.c.l.s4 1983009808
    %v287 = vunpack.c.0.s8 %v286
    %v288 = vlaneseq
    %v289 = vshrl.u32 %v288, 7
    %v290 = vsub.s32 %v287, %v289
    %v291 = vrot.slane %v282, %v290
    %292 = vrot.lane.b32.xlu0 %v291, 127
    %v293 = vpop.permute.xlu0 %292
    %v295 = vmul.f32 %v281, %v293
    %v296 = vadd.f32 %v283, %v295
    %vm297 = vcmask 1024
    %v298 = vsel %vm297, %v296, 0.0
    %299 = vadd.xlane.f32.xlu0 %v298
    %v300 = vpop.xlane.xlu0 %299
    %v301 = vrot.slane %v300, 4
    %v302 = vadd.f32 %v300, %v301
    %v303 = vrot.slane %v302, 2
    %v304 = vadd.f32 %v302, %v303
    %v305 = vrot.slane %v304, 1
    %v306 = vadd.f32 %v304, %v305
    %s307 = vtos %v306
    %s308 = scalar_lea.smem [#allocation6], 0
    %309 = sst [smem:[%s308]] %s307
    // Predicated region
    $region18: #{hand_reprojection_loss.1} parent=1 // pred_check
      _
    $region19: #{hand_reprojection_loss.1} parent=1 // pred_check_branch
      %311 = sbr.rel (0) target = $region21
    $region20: #{hand_reprojection_loss.1} parent=1 // pred_region
      %s313 = ssub.s32 16, 16
      %314 = vsyncadd [#allocation5], %s313
      %317 = dma.smem_to_hbm [#allocation6], 16, %s3, [#allocation5]
    $region21: #{hand_reprojection_loss.1} parent=1 // pred_fallthru
      _
    // Predicated region
    $region22: #{hand_reprojection_loss.1} parent=1 // pred_check
      _
    $region23: #{hand_reprojection_loss.1} parent=1 // pred_check_branch
      %319 = sbr.rel (0) target = $region25
    $region24: #{hand_reprojection_loss.1} parent=1 // pred_region
      %320 = dma.done [#allocation5], 16
    $region25: #{hand_reprojection_loss.1} parent=1 // pred_fallthru
      _
    %321 = sfence
    %322 = vsyncpa [#allocation4], 1
    %323 = vsyncpa [#allocation5], 1

</llo_original>
